<compile_context>
chip_gen: v7x
topology: tpu7x:2x2x1
jax: 0.10.0
libtpu: 0.0.40
codegen_flags: <defaults>
</compile_context>

<pallas_src>
import functools

import jax
import jax.numpy as jnp
from jax.experimental import pallas as pl
from jax.experimental.pallas import tpu as pltpu


def _round_up(n: int, m: int) -> int:
    return ((n + m - 1) // m) * m


def _vae_kernel(
    x_ref, eps_ref,
    w1_ref, b1_ref,        # [Xp, Hp] bf16, [1, Hp] f32
    wml_ref, bml_ref,      # fused head: [Hp, HEAD] bf16 (mu @ lanes [0,z), logvar @ [HEAD/2,..)), [1, HEAD] f32
    wd1_ref, bd1_ref,      # [HEAD, Hp] bf16 (only rows [0, z) nonzero), [1, Hp] f32
    wd2_ref, bd2_ref,      # [Hp, Xp] bf16, [1, Xp] f32
    out_ref, zml_ref,      # out: [TM, Xp]; zml: [TM, 2*HEAD] packed (z-slab | mu/logvar-slab)
    *, z_half,
):
    f32 = jnp.float32
    bf16 = jnp.bfloat16

    # ---- encoder ----
    x = x_ref[...].astype(bf16)
    h = jnp.dot(x, w1_ref[...], preferred_element_type=f32) + b1_ref[...]
    h = jnp.maximum(h, 0.0)  # relu (f32)

    # single 128-lane fused matmul for mu and logvar
    ml = jnp.dot(h.astype(bf16), wml_ref[...], preferred_element_type=f32) + bml_ref[...]
    # ml lanes: mu in [0, z_dim), logvar in [z_half, z_half + z_dim), zeros elsewhere.

    # ---- reparameterize (f32 elementwise) ----
    # Half-width lane rotate brings logvar to lanes [0, z_dim); shift == HEAD/2 so the
    # rotate is direction-agnostic.  Extra lanes hold finite junk only.
    lv = pltpu.roll(ml, shift=z_half, axis=1)
    std = jnp.exp(lv * 0.5)
    # eps is zero beyond z_dim, so lanes >= z_dim of z just carry ml's (finite) values;
    # they are annihilated by wd1's zero rows below and sliced off on the host.
    z = ml + std * eps_ref[...]

    # ---- decoder ----
    hd = jnp.dot(z.astype(bf16), wd1_ref[...], preferred_element_type=f32) + bd1_ref[...]
    hd = jnp.maximum(hd, 0.0)  # relu
    logits = jnp.dot(hd.astype(bf16), wd2_ref[...], preferred_element_type=f32) + bd2_ref[...]

    out_ref[...] = jax.nn.sigmoid(logits).astype(out_ref.dtype)
    # lane-aligned packed store: [ z-slab | mu/logvar-slab ]  (two full 128-lane blocks)
    zml_ref[...] = jnp.concatenate([z, ml], axis=1)


def prepare_params(params):
    """One-time padding / head-fusion / bf16 cast of the weights (hoisted off the hot path)."""
    x_dim, hidden_dim = params["w1"].shape
    z_dim = params["wmu"].shape[1]

    Xp = _round_up(x_dim, 128)
    Hp = _round_up(hidden_dim, 128)
    z_half = _round_up(z_dim, 64)         # mu occupies [0, z), logvar [z_half, z_half + z)
    HEAD = 2 * z_half                     # multiple of 128 (= 128 when z_dim <= 64)

    f32, bf16 = jnp.float32, jnp.bfloat16

    w1 = jnp.pad(params["w1"], ((0, Xp - x_dim), (0, Hp - hidden_dim))).astype(bf16)
    b1 = jnp.pad(params["b1"], ((0, 0), (0, Hp - hidden_dim))).astype(f32)

    wml = jnp.zeros((Hp, HEAD), f32)
    wml = wml.at[:hidden_dim, :z_dim].set(params["wmu"])
    wml = wml.at[:hidden_dim, z_half:z_half + z_dim].set(params["wlv"])
    wml = wml.astype(bf16)
    bml = jnp.zeros((1, HEAD), f32)
    bml = bml.at[:, :z_dim].set(params["bmu"])
    bml = bml.at[:, z_half:z_half + z_dim].set(params["blv"])

    wd1 = jnp.zeros((HEAD, Hp), f32).at[:z_dim, :hidden_dim].set(params["wd1"]).astype(bf16)
    bd1 = jnp.pad(params["bd1"], ((0, 0), (0, Hp - hidden_dim))).astype(f32)
    wd2 = jnp.pad(params["wd2"], ((0, Hp - hidden_dim), (0, Xp - x_dim))).astype(bf16)
    bd2 = jnp.pad(params["bd2"], ((0, 0), (0, Xp - x_dim))).astype(f32)

    return dict(w1=w1, b1=b1, wml=wml, bml=bml, wd1=wd1, bd1=bd1, wd2=wd2, bd2=bd2,
                x_dim=int(x_dim), hidden_dim=int(hidden_dim), z_dim=int(z_dim),
                head=int(HEAD))


@functools.partial(jax.jit, static_argnames=("x_dim", "z_dim", "head", "tile_b", "out_dtype"))
def _vae_forward_padded(x, eps, w1, b1, wml, bml, wd1, bd1, wd2, bd2,
                        *, x_dim, z_dim, head, tile_b, out_dtype):
    f32 = jnp.float32
    B = x.shape[0]
    Xp, Hp = w1.shape
    HEAD = head
    z_half = HEAD // 2
    Bp = _round_up(B, tile_b)

    # Batch + lane padding of the streaming inputs (inside jit; weights are pre-padded).
    xp = jnp.pad(x.astype(f32), ((0, Bp - B), (0, Xp - x_dim)))
    epsp = jnp.pad(eps.astype(f32), ((0, Bp - B), (0, HEAD - z_dim)))

    grid = (Bp // tile_b,)

    # ---- VMEM budget: resident bf16 weights + double-buffered activation tiles ----
    out_itemsize = jnp.dtype(out_dtype).itemsize
    weight_bytes = 2 * (Xp * Hp + Hp * HEAD + HEAD * Hp + Hp * Xp)       # bf16
    bias_bytes = 4 * (2 * Hp + HEAD + Xp)
    io_bytes = 4 * tile_b * (Xp + HEAD) + out_itemsize * tile_b * Xp + 4 * tile_b * 2 * HEAD
    act_bytes = 4 * tile_b * Hp * 2                                       # h / hd intermediates
    est = 2 * (weight_bytes + bias_bytes + io_bytes) + act_bytes          # x2: double buffering
    vmem_limit = int(min(56 * 2**20, max(32 * 2**20, 1.5 * est)))

    flops = 2 * Bp * (Xp * Hp + Hp * HEAD + HEAD * Hp + Hp * Xp)
    transcendentals = Bp * (HEAD + Xp)            # exp for std + exp inside sigmoid
    bytes_accessed = int(
        4 * Bp * Xp + 4 * Bp * HEAD               # x, eps
        + weight_bytes + bias_bytes
        + out_itemsize * Bp * Xp + 4 * Bp * 2 * HEAD
    )

    kernel = functools.partial(_vae_kernel, z_half=z_half)

    out_full, zml = pl.pallas_call(
        kernel,
        out_shape=(
            jax.ShapeDtypeStruct((Bp, Xp), out_dtype),      # recon output (lane-dense)
            jax.ShapeDtypeStruct((Bp, 2 * HEAD), f32),      # packed z | (mu,logvar)
        ),
        grid=grid,
        in_specs=[
            pl.BlockSpec((tile_b, Xp), lambda i: (i, 0)),     # x batch tile
            pl.BlockSpec((tile_b, HEAD), lambda i: (i, 0)),   # eps batch tile
            pl.BlockSpec((Xp, Hp), lambda i: (0, 0)),         # w1 (VMEM-resident)
            pl.BlockSpec((1, Hp), lambda i: (0, 0)),          # b1
            pl.BlockSpec((Hp, HEAD), lambda i: (0, 0)),       # fused w_mu|w_logvar head
            pl.BlockSpec((1, HEAD), lambda i: (0, 0)),        # fused bias
            pl.BlockSpec((HEAD, Hp), lambda i: (0, 0)),       # wd1
            pl.BlockSpec((1, Hp), lambda i: (0, 0)),          # bd1
            pl.BlockSpec((Hp, Xp), lambda i: (0, 0)),         # wd2
            pl.BlockSpec((1, Xp), lambda i: (0, 0)),          # bd2
        ],
        out_specs=(
            pl.BlockSpec((tile_b, Xp), lambda i: (i, 0)),
            pl.BlockSpec((tile_b, 2 * HEAD), lambda i: (i, 0)),
        ),
        compiler_params=pltpu.CompilerParams(
            dimension_semantics=("parallel",),
            vmem_limit_bytes=vmem_limit,
        ),
        cost_estimate=pl.CostEstimate(
            flops=flops,
            transcendentals=transcendentals,
            bytes_accessed=bytes_accessed,
        ),
    )(xp, epsp, w1, b1, wml, bml, wd1, bd1, wd2, bd2)

    # slice back to logical shapes
    output = out_full[:B, :x_dim]
    z = zml[:B, 0:z_dim]
    mu = zml[:B, HEAD:HEAD + z_dim]
    logvar = zml[:B, HEAD + z_half:HEAD + z_half + z_dim]
    return output, z, mu, logvar


def vae_forward(x, eps, prep, *, tile_b=None, out_dtype=jnp.float32):
    """Fused VAE forward.  `prep` = prepare_params(raw_params)."""
    B = x.shape[0]
    if tile_b is None:
        tile_b = min(512, _round_up(B, 8))
        if B > 8:
            # ensure >= 2 batch tiles so v7x's two TensorCores both get work
            tile_b = min(tile_b, _round_up(-(-B // 2), 8))
    tile_b = max(8, _round_up(int(tile_b), 8))

    return _vae_forward_padded(
        x, eps,
        prep["w1"], prep["b1"], prep["wml"], prep["bml"],
        prep["wd1"], prep["bd1"], prep["wd2"], prep["bd2"],
        x_dim=prep["x_dim"], z_dim=prep["z_dim"], head=prep["head"],
        tile_b=tile_b, out_dtype=out_dtype,
    )


def init_params(key, x_dim, hidden_dim, z_dim):
    """Deterministic PyTorch-Linear-style init (uniform +/- 1/sqrt(fan_in))."""
    def linear(k, fan_in, fan_out):
        kw, kb = jax.random.split(k)
        bound = 1.0 / jnp.sqrt(float(fan_in))
        w = jax.random.uniform(kw, (fan_in, fan_out), jnp.float32, -bound, bound)
        b = jax.random.uniform(kb, (1, fan_out), jnp.float32, -bound, bound)
        return w, b

    k1, k2, k3, k4, k5 = jax.random.split(key, 5)
    w1, b1 = linear(k1, x_dim, hidden_dim)
    wmu, bmu = linear(k2, hidden_dim, z_dim)
    wlv, blv = linear(k3, hidden_dim, z_dim)
    wd1, bd1 = linear(k4, z_dim, hidden_dim)
    wd2, bd2 = linear(k5, hidden_dim, x_dim)
    return dict(w1=w1, b1=b1, wmu=wmu, bmu=bmu, wlv=wlv, blv=blv,
                wd1=wd1, bd1=bd1, wd2=wd2, bd2=bd2)


def vae_forward_ref(x, eps, p):
    """Pure-JAX f32 reference for correctness checking."""
    h = jnp.maximum(x @ p["w1"] + p["b1"], 0.0)
    mu = h @ p["wmu"] + p["bmu"]
    logvar = h @ p["wlv"] + p["blv"]
    z = mu + jnp.exp(logvar * 0.5) * eps
    hd = jnp.maximum(z @ p["wd1"] + p["bd1"], 0.0)
    out = jax.nn.sigmoid(hd @ p["wd2"] + p["bd2"])
    return out, z, mu, logvar


if __name__ == "__main__":
    # Toy shapes for correctness; at this size the call is launch-overhead bound —
    # benchmark with B >= 1024 to see the bf16 / lane-dense / pipelined layout pay off.
    X_DIM, HIDDEN_DIM, Z_DIM = 64, 32, 10

    key = jax.random.PRNGKey(0)
    k_params, k_x, k_eps = jax.random.split(key, 3)

    params = init_params(k_params, X_DIM, HIDDEN_DIM, Z_DIM)
    prep = prepare_params(params)  # one-time pad / fuse / bf16 cast

    ok = True
    # bf16 matmuls -> compare against the f32 reference with a loosened tolerance.
    for B in (8, 24):  # 1-tile case and a multi-tile (pipelined) case
        kx, ke = jax.random.fold_in(k_x, B), jax.random.fold_in(k_eps, B)
        x = jax.random.uniform(kx, (B, X_DIM), jnp.float32)   # [0,1] like BCE-VAE inputs
        eps = jax.random.normal(ke, (B, Z_DIM), jnp.float32)

        got = jax.block_until_ready(vae_forward(x, eps, prep))
        want = vae_forward_ref(x, eps, params)
        for g, w in zip(got, want):
            assert g.shape == w.shape and g.dtype == w.dtype
            ok &= bool(jnp.allclose(g, w, atol=5e-2, rtol=5e-2))

    assert ok, "mismatch vs reference"
    print("KERNEL_OK")
</pallas_src>

<mosaic_0001>
module attributes {stable_mosaic.version = 11 : i64} {
  func.func @_vae_kernel(%arg0: i32, %arg1: memref<8x128xf32, #tpu.memory_space<vmem>>, %arg2: memref<8x128xf32, #tpu.memory_space<vmem>>, %arg3: memref<128x128xbf16, #tpu.memory_space<vmem>>, %arg4: memref<1x128xf32, #tpu.memory_space<vmem>>, %arg5: memref<128x128xbf16, #tpu.memory_space<vmem>>, %arg6: memref<1x128xf32, #tpu.memory_space<vmem>>, %arg7: memref<128x128xbf16, #tpu.memory_space<vmem>>, %arg8: memref<1x128xf32, #tpu.memory_space<vmem>>, %arg9: memref<128x128xbf16, #tpu.memory_space<vmem>>, %arg10: memref<1x128xf32, #tpu.memory_space<vmem>>, %arg11: memref<8x128xf32, #tpu.memory_space<vmem>>, %arg12: memref<8x256xf32, #tpu.memory_space<vmem>>) attributes {dimension_semantics = [#tpu.dimension_semantics<parallel>], iteration_bounds = array<i64: 1>, scalar_prefetch = 0 : i64, scratch_operands = 0 : i64, tpu.core_type = #tpu.core_type<tc>, window_params = [{transform_indices = @transform_0, window_bounds = array<i64: 8, 128>}, {transform_indices = @transform_1, window_bounds = array<i64: 8, 128>}, {pipeline_mode = #tpu.pipeline_mode<synchronous>, transform_indices = @transform_2, window_bounds = array<i64: 128, 128>}, {pipeline_mode = #tpu.pipeline_mode<synchronous>, transform_indices = @transform_3, window_bounds = array<i64: 1, 128>}, {pipeline_mode = #tpu.pipeline_mode<synchronous>, transform_indices = @transform_4, window_bounds = array<i64: 128, 128>}, {pipeline_mode = #tpu.pipeline_mode<synchronous>, transform_indices = @transform_5, window_bounds = array<i64: 1, 128>}, {pipeline_mode = #tpu.pipeline_mode<synchronous>, transform_indices = @transform_6, window_bounds = array<i64: 128, 128>}, {pipeline_mode = #tpu.pipeline_mode<synchronous>, transform_indices = @transform_7, window_bounds = array<i64: 1, 128>}, {pipeline_mode = #tpu.pipeline_mode<synchronous>, transform_indices = @transform_8, window_bounds = array<i64: 128, 128>}, {pipeline_mode = #tpu.pipeline_mode<synchronous>, transform_indices = @transform_9, window_bounds = array<i64: 1, 128>}, {transform_indices = @transform_10, window_bounds = array<i64: 8, 128>}, {transform_indices = @transform_11, window_bounds = array<i64: 8, 256>}]} {
    %c0 = arith.constant 0 : index
    %c0_0 = arith.constant 0 : index
    %0 = vector.load %arg1[%c0, %c0_0] : memref<8x128xf32, #tpu.memory_space<vmem>>, vector<8x128xf32>
    %1 = arith.truncf %0 : vector<8x128xf32> to vector<8x128xbf16>
    %c0_1 = arith.constant 0 : index
    %c0_2 = arith.constant 0 : index
    %2 = vector.load %arg3[%c0_1, %c0_2] : memref<128x128xbf16, #tpu.memory_space<vmem>>, vector<128x128xbf16>
    %cst = arith.constant dense<0.000000e+00> : vector<8x128xf32>
    %3 = tpu.matmul %1, %2, %cst {dimension_numbers = #tpu.dot_dimension_numbers<[1], [0], [0], [1], [0, 0, 1, 1], [], []>} : vector<8x128xbf16>, vector<128x128xbf16>, vector<8x128xf32> -> vector<8x128xf32>
    %c0_3 = arith.constant 0 : index
    %c0_4 = arith.constant 0 : index
    %4 = vector.load %arg4[%c0_3, %c0_4] : memref<1x128xf32, #tpu.memory_space<vmem>>, vector<1x128xf32>
    %5 = vector.broadcast %4 : vector<1x128xf32> to vector<8x128xf32>
    %6 = arith.addf %3, %5 : vector<8x128xf32>
    %cst_5 = arith.constant 0.000000e+00 : f32
    %7 = vector.broadcast %cst_5 : f32 to vector<8x128xf32>
    %8 = arith.maximumf %6, %7 : vector<8x128xf32>
    %9 = arith.truncf %8 : vector<8x128xf32> to vector<8x128xbf16>
    %c0_6 = arith.constant 0 : index
    %c0_7 = arith.constant 0 : index
    %10 = vector.load %arg5[%c0_6, %c0_7] : memref<128x128xbf16, #tpu.memory_space<vmem>>, vector<128x128xbf16>
    %cst_8 = arith.constant dense<0.000000e+00> : vector<8x128xf32>
    %11 = tpu.matmul %9, %10, %cst_8 {dimension_numbers = #tpu.dot_dimension_numbers<[1], [0], [0], [1], [0, 0, 1, 1], [], []>} : vector<8x128xbf16>, vector<128x128xbf16>, vector<8x128xf32> -> vector<8x128xf32>
    %c0_9 = arith.constant 0 : index
    %c0_10 = arith.constant 0 : index
    %12 = vector.load %arg6[%c0_9, %c0_10] : memref<1x128xf32, #tpu.memory_space<vmem>>, vector<1x128xf32>
    %13 = vector.broadcast %12 : vector<1x128xf32> to vector<8x128xf32>
    %14 = arith.addf %11, %13 : vector<8x128xf32>
    %c64_i32 = arith.constant 64 : i32
    %15 = tpu.dynamic_rotate %14 by %c64_i32 dim 1 : vector<8x128xf32>, i32 -> vector<8x128xf32>
    %cst_11 = arith.constant 5.000000e-01 : f32
    %16 = vector.broadcast %cst_11 : f32 to vector<8x128xf32>
    %17 = arith.mulf %15, %16 : vector<8x128xf32>
    %18 = math.exp %17 : vector<8x128xf32>
    %c0_12 = arith.constant 0 : index
    %c0_13 = arith.constant 0 : index
    %19 = vector.load %arg2[%c0_12, %c0_13] : memref<8x128xf32, #tpu.memory_space<vmem>>, vector<8x128xf32>
    %20 = arith.mulf %18, %19 : vector<8x128xf32>
    %21 = arith.addf %14, %20 : vector<8x128xf32>
    %22 = arith.truncf %21 : vector<8x128xf32> to vector<8x128xbf16>
    %c0_14 = arith.constant 0 : index
    %c0_15 = arith.constant 0 : index
    %23 = vector.load %arg7[%c0_14, %c0_15] : memref<128x128xbf16, #tpu.memory_space<vmem>>, vector<128x128xbf16>
    %cst_16 = arith.constant dense<0.000000e+00> : vector<8x128xf32>
    %24 = tpu.matmul %22, %23, %cst_16 {dimension_numbers = #tpu.dot_dimension_numbers<[1], [0], [0], [1], [0, 0, 1, 1], [], []>} : vector<8x128xbf16>, vector<128x128xbf16>, vector<8x128xf32> -> vector<8x128xf32>
    %c0_17 = arith.constant 0 : index
    %c0_18 = arith.constant 0 : index
    %25 = vector.load %arg8[%c0_17, %c0_18] : memref<1x128xf32, #tpu.memory_space<vmem>>, vector<1x128xf32>
    %26 = vector.broadcast %25 : vector<1x128xf32> to vector<8x128xf32>
    %27 = arith.addf %24, %26 : vector<8x128xf32>
    %cst_19 = arith.constant 0.000000e+00 : f32
    %28 = vector.broadcast %cst_19 : f32 to vector<8x128xf32>
    %29 = arith.maximumf %27, %28 : vector<8x128xf32>
    %30 = arith.truncf %29 : vector<8x128xf32> to vector<8x128xbf16>
    %c0_20 = arith.constant 0 : index
    %c0_21 = arith.constant 0 : index
    %31 = vector.load %arg9[%c0_20, %c0_21] : memref<128x128xbf16, #tpu.memory_space<vmem>>, vector<128x128xbf16>
    %cst_22 = arith.constant dense<0.000000e+00> : vector<8x128xf32>
    %32 = tpu.matmul %30, %31, %cst_22 {dimension_numbers = #tpu.dot_dimension_numbers<[1], [0], [0], [1], [0, 0, 1, 1], [], []>} : vector<8x128xbf16>, vector<128x128xbf16>, vector<8x128xf32> -> vector<8x128xf32>
    %c0_23 = arith.constant 0 : index
    %c0_24 = arith.constant 0 : index
    %33 = vector.load %arg10[%c0_23, %c0_24] : memref<1x128xf32, #tpu.memory_space<vmem>>, vector<1x128xf32>
    %34 = vector.broadcast %33 : vector<1x128xf32> to vector<8x128xf32>
    %35 = arith.addf %32, %34 : vector<8x128xf32>
    %36 = arith.negf %35 : vector<8x128xf32>
    %37 = math.exp %36 : vector<8x128xf32>
    %cst_25 = arith.constant 1.000000e+00 : f32
    %38 = vector.broadcast %cst_25 : f32 to vector<8x128xf32>
    %39 = arith.addf %38, %37 : vector<8x128xf32>
    %40 = arith.divf %38, %39 : vector<8x128xf32>
    %c0_26 = arith.constant 0 : index
    %c0_27 = arith.constant 0 : index
    %41 = vector.load %arg11[%c0_26, %c0_27] : memref<8x128xf32, #tpu.memory_space<vmem>>, vector<8x128xf32>
    tpu.vector_store %arg11[%c0_26, %c0_27], %40 {strides = array<i32>} : memref<8x128xf32, #tpu.memory_space<vmem>>, vector<8x128xf32>,
    %42 = tpu.concatenate %21, %14 in 1 : vector<8x128xf32>, vector<8x128xf32> -> vector<8x256xf32>
    %c0_28 = arith.constant 0 : index
    %c0_29 = arith.constant 0 : index
    %43 = vector.load %arg12[%c0_28, %c0_29] : memref<8x256xf32, #tpu.memory_space<vmem>>, vector<8x256xf32>
    tpu.vector_store %arg12[%c0_28, %c0_29], %42 {strides = array<i32>} : memref<8x256xf32, #tpu.memory_space<vmem>>, vector<8x256xf32>,
    return
  }
  func.func @transform_0(%arg0: i32) -> (i32, i32) {
    %c0_i32 = arith.constant 0 : i32
    %c0_i32_0 = arith.constant 0 : i32
    return %arg0, %c0_i32 : i32, i32
  }
  func.func @transform_1(%arg0: i32) -> (i32, i32) {
    %c0_i32 = arith.constant 0 : i32
    %c0_i32_0 = arith.constant 0 : i32
    return %arg0, %c0_i32 : i32, i32
  }
  func.func @transform_2(%arg0: i32) -> (i32, i32) {
    %c0_i32 = arith.constant 0 : i32
    %c0_i32_0 = arith.constant 0 : i32
    %c0_i32_1 = arith.constant 0 : i32
    return %c0_i32, %c0_i32_0 : i32, i32
  }
  func.func @transform_3(%arg0: i32) -> (i32, i32) {
    %c0_i32 = arith.constant 0 : i32
    %c0_i32_0 = arith.constant 0 : i32
    %c0_i32_1 = arith.constant 0 : i32
    return %c0_i32, %c0_i32_0 : i32, i32
  }
  func.func @transform_4(%arg0: i32) -> (i32, i32) {
    %c0_i32 = arith.constant 0 : i32
    %c0_i32_0 = arith.constant 0 : i32
    %c0_i32_1 = arith.constant 0 : i32
    return %c0_i32, %c0_i32_0 : i32, i32
  }
  func.func @transform_5(%arg0: i32) -> (i32, i32) {
    %c0_i32 = arith.constant 0 : i32
    %c0_i32_0 = arith.constant 0 : i32
    %c0_i32_1 = arith.constant 0 : i32
    return %c0_i32, %c0_i32_0 : i32, i32
  }
  func.func @transform_6(%arg0: i32) -> (i32, i32) {
    %c0_i32 = arith.constant 0 : i32
    %c0_i32_0 = arith.constant 0 : i32
    %c0_i32_1 = arith.constant 0 : i32
    return %c0_i32, %c0_i32_0 : i32, i32
  }
  func.func @transform_7(%arg0: i32) -> (i32, i32) {
    %c0_i32 = arith.constant 0 : i32
    %c0_i32_0 = arith.constant 0 : i32
    %c0_i32_1 = arith.constant 0 : i32
    return %c0_i32, %c0_i32_0 : i32, i32
  }
  func.func @transform_8(%arg0: i32) -> (i32, i32) {
    %c0_i32 = arith.constant 0 : i32
    %c0_i32_0 = arith.constant 0 : i32
    %c0_i32_1 = arith.constant 0 : i32
    return %c0_i32, %c0_i32_0 : i32, i32
  }
  func.func @transform_9(%arg0: i32) -> (i32, i32) {
    %c0_i32 = arith.constant 0 : i32
    %c0_i32_0 = arith.constant 0 : i32
    %c0_i32_1 = arith.constant 0 : i32
    return %c0_i32, %c0_i32_0 : i32, i32
  }
  func.func @transform_10(%arg0: i32) -> (i32, i32) {
    %c0_i32 = arith.constant 0 : i32
    %c0_i32_0 = arith.constant 0 : i32
    return %arg0, %c0_i32 : i32, i32
  }
  func.func @transform_11(%arg0: i32) -> (i32, i32) {
    %c0_i32 = arith.constant 0 : i32
    %c0_i32_0 = arith.constant 0 : i32
    return %arg0, %c0_i32 : i32, i32
  }
}

</mosaic_0001>

<llo_original>
// kernel: _vae_forward_padded.1
$region0: #{_vae_forward_padded.1}
  #allocation0 [shape = 'u32[]', space=smem, size = 0x4, offset = 0x4, fixed_abs, tag = 'smem constant byte address 0x4 - core index']
  #allocation1 [shape = 'u32[144,128]{1,0:T(1,128)}', space=vmem, size = 0x12000, scoped, tag = 'internal scratch']
  %s0 = inlined_call_operand.vmem [shape: f32[8,128], index: 0, kind: input, shape index: {}]
  %s1 = inlined_call_operand.vmem [shape: f32[8,128], index: 1, kind: input, shape index: {}]
  %s2 = inlined_call_operand.hbm [shape: bf16[128,128], index: 2, kind: input, shape index: {}]
  %s3 = inlined_call_operand.hbm [shape: f32[1,128], index: 3, kind: input, shape index: {}]
  %s4 = inlined_call_operand.hbm [shape: bf16[128,128], index: 4, kind: input, shape index: {}]
  %s5 = inlined_call_operand.hbm [shape: f32[1,128], index: 5, kind: input, shape index: {}]
  %s6 = inlined_call_operand.hbm [shape: bf16[128,128], index: 6, kind: input, shape index: {}]
  %s7 = inlined_call_operand.hbm [shape: f32[1,128], index: 7, kind: input, shape index: {}]
  %s8 = inlined_call_operand.vmem [shape: bf16[128,128], index: 8, kind: input, shape index: {}]
  %s9 = inlined_call_operand.vmem [shape: f32[1,128], index: 9, kind: input, shape index: {}]
  %s10 = inlined_call_operand.hbm [shape: f32[8,128], index: 10, kind: output, shape index: {0}]
  %s11 = inlined_call_operand.vmem [shape: f32[8,256], index: 11, kind: output, shape index: {1}]
  %12 = xla_tuple %s10, %s11
  %s13 = sld [smem:[#allocation0]]
  $region82: #{_vae_forward_padded.1} parent=0
    _
  %s15 = ssub.s32 1, %s13
  %s16 = scalar_select 0, %s15, %s13
  $region1: #{_vae_forward_padded.1} parent=0
    #allocation2 [shape = 'u8[32768]{0}', space=vmem, size = 0x8000, scoped, tag = 'input window, operand 2, single buffered']
    #allocation3 [shape = 's32[1]{0}', space=sflag, size = 0x4, scoped, tag = 'scoped memory for _vae_forward_padded.1']
    #allocation4 [shape = 's32[1]{0}', space=sflag, size = 0x4, scoped, tag = 'scoped memory for _vae_forward_padded.1']
    #allocation5 [shape = 'u8[512]{0}', space=vmem, size = 0x400, scoped, tag = 'input window, operand 3, single buffered']
    #allocation6 [shape = 's32[1]{0}', space=sflag, size = 0x4, scoped, tag = 'scoped memory for _vae_forward_padded.1']
    #allocation7 [shape = 'u8[32768]{0}', space=vmem, size = 0x8000, scoped, tag = 'input window, operand 4, single buffered']
    #allocation8 [shape = 'u8[512]{0}', space=vmem, size = 0x400, scoped, tag = 'input window, operand 5, single buffered']
    #allocation9 [shape = 's32[1]{0}', space=sflag, size = 0x4, scoped, tag = 'scoped memory for _vae_forward_padded.1']
    #allocation10 [shape = 'u8[32768]{0}', space=vmem, size = 0x8000, scoped, tag = 'input window, operand 6, single buffered']
    #allocation11 [shape = 'u8[512]{0}', space=vmem, size = 0x400, scoped, tag = 'input window, operand 7, single buffered']
    #allocation12 [shape = 's32[1]{0}', space=sflag, size = 0x4, scoped, tag = 'scoped memory for _vae_forward_padded.1']
    #allocation13 [shape = 'u8[4096]{0}', space=vmem, size = 0x1000, scoped, tag = 'output window, operand 0, single buffered']
    %17 = vsyncpa [#allocation3], 0
    %18 = vsyncpa [#allocation6], 0
    %19 = vsyncpa [#allocation9], 0
    %20 = vsyncpa [#allocation12], 0
    %21 = vsyncpa [#allocation4], 0
    // Predicated region
    $region2: #{_vae_forward_padded.1} parent=1 // pred_check
      _
    $region3: #{_vae_forward_padded.1} parent=1 // pred_check_branch
      %23 = sbr.rel (0) target = $region5
    $region4: #{_vae_forward_padded.1} parent=1 // pred_region
      _
    $region5: #{_vae_forward_padded.1} parent=1 // pred_fallthru
      _
    // Predicated region
    $region6: #{_vae_forward_padded.1} parent=1 // pred_check
      _
    $region7: #{_vae_forward_padded.1} parent=1 // pred_check_branch
      %25 = sbr.rel (0) target = $region9
    $region8: #{_vae_forward_padded.1} parent=1 // pred_region
      _
    $region9: #{_vae_forward_padded.1} parent=1 // pred_fallthru
      _
    // Predicated region
    $region10: #{_vae_forward_padded.1} parent=1 // pred_check
      _
    $region11: #{_vae_forward_padded.1} parent=1 // pred_check_branch
      %27 = sbr.rel (0) target = $region13
    $region12: #{_vae_forward_padded.1} parent=1 // pred_region
      %s29 = ssub.s32 1024, 1024
      %30 = vsyncadd [#allocation3], %s29
      %s31 = sshll.u32 [#allocation2], 4
      %s32 = int_to_ptr.vmem [resolvable:$true] %s31
      %37 = dma.hbm_to_vmem [thread:$0]  %s2, 1024, %s32, [#allocation3], 64, 64, 4
    $region13: #{_vae_forward_padded.1} parent=1 // pred_fallthru
      _
    // Predicated region
    $region14: #{_vae_forward_padded.1} parent=1 // pred_check
      _
    $region15: #{_vae_forward_padded.1} parent=1 // pred_check_branch
      %39 = sbr.rel (0) target = $region17
    $region16: #{_vae_forward_padded.1} parent=1 // pred_region
      %s41 = ssub.s32 16, 16
      %42 = vsyncadd [#allocation6], %s41
      %s44 = sshll.u32 [#allocation5], 4
      %s45 = int_to_ptr.vmem [resolvable:$true] %s44
      %47 = dma.hbm_to_vmem [thread:$0]  %s3, 16, %s45, [#allocation6]
    $region17: #{_vae_forward_padded.1} parent=1 // pred_fallthru
      _
    // Predicated region
    $region18: #{_vae_forward_padded.1} parent=1 // pred_check
      _
    $region19: #{_vae_forward_padded.1} parent=1 // pred_check_branch
      %49 = sbr.rel (0) target = $region21
    $region20: #{_vae_forward_padded.1} parent=1 // pred_region
      %s51 = ssub.s32 1024, 1024
      %52 = vsyncadd [#allocation6], %s51
      %s53 = sshll.u32 [#allocation7], 4
      %s54 = int_to_ptr.vmem [resolvable:$true] %s53
      %59 = dma.hbm_to_vmem [thread:$0]  %s4, 1024, %s54, [#allocation6], 64, 64, 4
    $region21: #{_vae_forward_padded.1} parent=1 // pred_fallthru
      _
    // Predicated region
    $region22: #{_vae_forward_padded.1} parent=1 // pred_check
      _
    $region23: #{_vae_forward_padded.1} parent=1 // pred_check_branch
      %61 = sbr.rel (0) target = $region25
    $region24: #{_vae_forward_padded.1} parent=1 // pred_region
      %s63 = ssub.s32 16, 16
      %64 = vsyncadd [#allocation9], %s63
      %s66 = sshll.u32 [#allocation8], 4
      %s67 = int_to_ptr.vmem [resolvable:$true] %s66
      %69 = dma.hbm_to_vmem [thread:$0]  %s5, 16, %s67, [#allocation9]
    $region25: #{_vae_forward_padded.1} parent=1 // pred_fallthru
      _
    // Predicated region
    $region26: #{_vae_forward_padded.1} parent=1 // pred_check
      _
    $region27: #{_vae_forward_padded.1} parent=1 // pred_check_branch
      %71 = sbr.rel (0) target = $region29
    $region28: #{_vae_forward_padded.1} parent=1 // pred_region
      %s73 = ssub.s32 1024, 1024
      %74 = vsyncadd [#allocation9], %s73
      %s75 = sshll.u32 [#allocation10], 4
      %s76 = int_to_ptr.vmem [resolvable:$true] %s75
      %81 = dma.hbm_to_vmem [thread:$0]  %s6, 1024, %s76, [#allocation9], 64, 64, 4
    $region29: #{_vae_forward_padded.1} parent=1 // pred_fallthru
      _
    // Predicated region
    $region30: #{_vae_forward_padded.1} parent=1 // pred_check
      _
    $region31: #{_vae_forward_padded.1} parent=1 // pred_check_branch
      %83 = sbr.rel (0) target = $region33
    $region32: #{_vae_forward_padded.1} parent=1 // pred_region
      %s85 = ssub.s32 16, 16
      %86 = vsyncadd [#allocation12], %s85
      %s88 = sshll.u32 [#allocation11], 4
      %s89 = int_to_ptr.vmem [resolvable:$true] %s88
      %91 = dma.hbm_to_vmem [thread:$0]  %s7, 16, %s89, [#allocation12]
    $region33: #{_vae_forward_padded.1} parent=1 // pred_fallthru
      _
    // Predicated region
    $region34: #{_vae_forward_padded.1} parent=1 // pred_check
      _
    $region35: #{_vae_forward_padded.1} parent=1 // pred_check_branch
      %93 = sbr.rel (0) target = $region37
    $region36: #{_vae_forward_padded.1} parent=1 // pred_region
      _
    $region37: #{_vae_forward_padded.1} parent=1 // pred_fallthru
      _
    // Predicated region
    $region38: #{_vae_forward_padded.1} parent=1 // pred_check
      _
    $region39: #{_vae_forward_padded.1} parent=1 // pred_check_branch
      %95 = sbr.rel (0) target = $region41
    $region40: #{_vae_forward_padded.1} parent=1 // pred_region
      _
    $region41: #{_vae_forward_padded.1} parent=1 // pred_fallthru
      _
    // Predicated region
    $region42: #{_vae_forward_padded.1} parent=1 // pred_check
      _
    $region43: #{_vae_forward_padded.1} parent=1 // pred_check_branch
      %97 = sbr.rel (0) target = $region45
    $region44: #{_vae_forward_padded.1} parent=1 // pred_region
      %98 = dma.done [#allocation3], 1024
    $region45: #{_vae_forward_padded.1} parent=1 // pred_fallthru
      _
    // Predicated region
    $region46: #{_vae_forward_padded.1} parent=1 // pred_check
      _
    $region47: #{_vae_forward_padded.1} parent=1 // pred_check_branch
      %100 = sbr.rel (0) target = $region49
    $region48: #{_vae_forward_padded.1} parent=1 // pred_region
      %101 = dma.done [#allocation6], 16
    $region49: #{_vae_forward_padded.1} parent=1 // pred_fallthru
      _
    // Predicated region
    $region50: #{_vae_forward_padded.1} parent=1 // pred_check
      _
    $region51: #{_vae_forward_padded.1} parent=1 // pred_check_branch
      %103 = sbr.rel (0) target = $region53
    $region52: #{_vae_forward_padded.1} parent=1 // pred_region
      %104 = dma.done [#allocation6], 1024
    $region53: #{_vae_forward_padded.1} parent=1 // pred_fallthru
      _
    // Predicated region
    $region54: #{_vae_forward_padded.1} parent=1 // pred_check
      _
    $region55: #{_vae_forward_padded.1} parent=1 // pred_check_branch
      %106 = sbr.rel (0) target = $region57
    $region56: #{_vae_forward_padded.1} parent=1 // pred_region
      %107 = dma.done [#allocation9], 16
    $region57: #{_vae_forward_padded.1} parent=1 // pred_fallthru
      _
    // Predicated region
    $region58: #{_vae_forward_padded.1} parent=1 // pred_check
      _
    $region59: #{_vae_forward_padded.1} parent=1 // pred_check_branch
      %109 = sbr.rel (0) target = $region61
    $region60: #{_vae_forward_padded.1} parent=1 // pred_region
      %110 = dma.done [#allocation9], 1024
    $region61: #{_vae_forward_padded.1} parent=1 // pred_fallthru
      _
    // Predicated region
    $region62: #{_vae_forward_padded.1} parent=1 // pred_check
      _
    $region63: #{_vae_forward_padded.1} parent=1 // pred_check_branch
      %112 = sbr.rel (0) target = $region65
    $region64: #{_vae_forward_padded.1} parent=1 // pred_region
      %113 = dma.done [#allocation12], 16
    $region65: #{_vae_forward_padded.1} parent=1 // pred_fallthru
      _
    %v115 = vld [vmem:[%s0] sm:$0xff]
    %v116 = vpack.c.bf16 %v115, %v115
    %v117 = vld [vmem:[#allocation2] sm:$0xf]
    %v118 = vld [vmem:[#allocation2 + $0x4] sm:$0xf]
    %v119 = vld [vmem:[#allocation2 + $0x8] sm:$0xf]
    %v120 = vld [vmem:[#allocation2 + $0xc] sm:$0xf]
    %v121 = vld [vmem:[#allocation2 + $0x10] sm:$0xf]
    %v122 = vld [vmem:[#allocation2 + $0x14] sm:$0xf]
    %v123 = vld [vmem:[#allocation2 + $0x18] sm:$0xf]
    %v124 = vld [vmem:[#allocation2 + $0x1c] sm:$0xf]
    %v125 = vld [vmem:[#allocation2 + $0x20] sm:$0xf]
    %v126 = vld [vmem:[#allocation2 + $0x24] sm:$0xf]
    %v127 = vld [vmem:[#allocation2 + $0x28] sm:$0xf]
    %v128 = vld [vmem:[#allocation2 + $0x2c] sm:$0xf]
    %v129 = vld [vmem:[#allocation2 + $0x30] sm:$0xf]
    %v130 = vld [vmem:[#allocation2 + $0x34] sm:$0xf]
    %v131 = vld [vmem:[#allocation2 + $0x38] sm:$0xf]
    %v132 = vld [vmem:[#allocation2 + $0x3c] sm:$0xf]
    %v133 = vld [vmem:[#allocation5] sm:$0x1]
    %v135 = vlaneseq
    %v136 = vshrl.u32 %v135, 7
    %v137 = vsub.s32 0, %v136
    %v138 = vrot.slane %v133, %v137
    %v156 = vunpack.c.l.b16 %v117
    %v157 = vunpack.c.l.b16 %v118
    %v158 = vunpack.c.l.b16 %v119
    %v159 = vunpack.c.l.b16 %v120
    %v160 = vunpack.c.l.b16 %v121
    %v161 = vunpack.c.l.b16 %v122
    %v162 = vunpack.c.l.b16 %v123
    %v163 = vunpack.c.l.b16 %v124
    %v164 = vunpack.c.l.b16 %v125
    %v165 = vunpack.c.l.b16 %v126
    %v166 = vunpack.c.l.b16 %v127
    %v167 = vunpack.c.l.b16 %v128
    %v168 = vunpack.c.l.b16 %v129
    %v169 = vunpack.c.l.b16 %v130
    %v170 = vunpack.c.l.b16 %v131
    %v171 = vunpack.c.l.b16 %v132
    %v172 = vpack.c.b16 %v157, %v156
    %v173 = vpack.c.b16 %v159, %v158
    %v174 = vpack.c.b16 %v161, %v160
    %v175 = vpack.c.b16 %v163, %v162
    %v176 = vpack.c.b16 %v165, %v164
    %v177 = vpack.c.b16 %v167, %v166
    %v178 = vpack.c.b16 %v169, %v168
    %v179 = vpack.c.b16 %v171, %v170
    %188 = vmatprep.subr.bf16.mxu0 0
    %189 = vmatpush1.bf16.msra.mxu0 %v172
    %190 = vmatprep.subr.bf16.mxu0 0
    %191 = vmatpush1.bf16.msra.mxu0 %v173
    %192 = vmatprep.subr.bf16.mxu0 0
    %193 = vmatpush1.bf16.msra.mxu0 %v174
    %194 = vmatprep.subr.bf16.mxu0 0
    %195 = vmatpush1.bf16.msra.mxu0 %v175
    %196 = vmatprep.subr.bf16.mxu0 0
    %197 = vmatpush1.bf16.msra.mxu0 %v176
    %198 = vmatprep.subr.bf16.mxu0 0
    %199 = vmatpush1.bf16.msra.mxu0 %v177
    %200 = vmatprep.subr.bf16.mxu0 0
    %201 = vmatpush1.bf16.msra.mxu0 %v178
    %202 = vmatprep.subr.bf16.mxu0 0
    %203 = vmatpush1.bf16.msra.mxu0 %v179
    %204 = vmatprep.subr.bf16.mxu0 0
    %205 = vmatpush1.bf16.msra.mxu0 0
    %206 = vmatprep.subr.bf16.mxu0 0
    %207 = vmatpush1.bf16.msra.mxu0 0
    %208 = vmatprep.subr.bf16.mxu0 0
    %209 = vmatpush1.bf16.msra.mxu0 0
    %210 = vmatprep.subr.bf16.mxu0 0
    %211 = vmatpush1.bf16.msra.mxu0 0
    %212 = vmatprep.subr.bf16.mxu0 0
    %213 = vmatpush1.bf16.msra.mxu0 0
    %214 = vmatprep.subr.bf16.mxu0 0
    %215 = vmatpush1.bf16.msra.mxu0 0
    %216 = vmatprep.subr.bf16.mxu0 0
    %217 = vmatpush1.bf16.msra.mxu0 0
    %218 = vmatprep.subr.bf16.mxu0 0
    %219 = vmatpush1.bf16.msra.mxu0 0
    %220 = vmatprep.mubr.bf16.mxu0 0
    %221 = vmatmul.mubr.bf16.gmra.mrb[0].mxu0 %v116
    %v222 = vpop.f32.mrb[0].mxu0
    %v223 = vadd.f32 %v138, %v222
    %v224 = vpop.f32.mrb[0].mxu0
    %v225 = vpop.f32.mrb[0].mxu0
    %v226 = vpop.f32.mrb[0].mxu0
    %227 = vdwg.mxu0
    %v228 = vmax.f32 %v223, 0.0
    %v229 = vpack.c.bf16 %v228, %v228
    %v230 = vld [vmem:[#allocation7] sm:$0xf]
    %v231 = vld [vmem:[#allocation7 + $0x4] sm:$0xf]
    %v232 = vld [vmem:[#allocation7 + $0x8] sm:$0xf]
    %v233 = vld [vmem:[#allocation7 + $0xc] sm:$0xf]
    %v234 = vld [vmem:[#allocation7 + $0x10] sm:$0xf]
    %v235 = vld [vmem:[#allocation7 + $0x14] sm:$0xf]
    %v236 = vld [vmem:[#allocation7 + $0x18] sm:$0xf]
    %v237 = vld [vmem:[#allocation7 + $0x1c] sm:$0xf]
    %v238 = vld [vmem:[#allocation7 + $0x20] sm:$0xf]
    %v239 = vld [vmem:[#allocation7 + $0x24] sm:$0xf]
    %v240 = vld [vmem:[#allocation7 + $0x28] sm:$0xf]
    %v241 = vld [vmem:[#allocation7 + $0x2c] sm:$0xf]
    %v242 = vld [vmem:[#allocation7 + $0x30] sm:$0xf]
    %v243 = vld [vmem:[#allocation7 + $0x34] sm:$0xf]
    %v244 = vld [vmem:[#allocation7 + $0x38] sm:$0xf]
    %v245 = vld [vmem:[#allocation7 + $0x3c] sm:$0xf]
    %v246 = vld [vmem:[#allocation8] sm:$0x1]
    %v248 = vlaneseq
    %v249 = vshrl.u32 %v248, 7
    %v250 = vsub.s32 0, %v249
    %v251 = vrot.slane %v246, %v250
    %v269 = vunpack.c.l.b16 %v230
    %v270 = vunpack.c.l.b16 %v231
    %v271 = vunpack.c.l.b16 %v232
    %v272 = vunpack.c.l.b16 %v233
    %v273 = vunpack.c.l.b16 %v234
    %v274 = vunpack.c.l.b16 %v235
    %v275 = vunpack.c.l.b16 %v236
    %v276 = vunpack.c.l.b16 %v237
    %v277 = vunpack.c.l.b16 %v238
    %v278 = vunpack.c.l.b16 %v239
    %v279 = vunpack.c.l.b16 %v240
    %v280 = vunpack.c.l.b16 %v241
    %v281 = vunpack.c.l.b16 %v242
    %v282 = vunpack.c.l.b16 %v243
    %v283 = vunpack.c.l.b16 %v244
    %v284 = vunpack.c.l.b16 %v245
    %v285 = vpack.c.b16 %v270, %v269
    %v286 = vpack.c.b16 %v272, %v271
    %v287 = vpack.c.b16 %v274, %v273
    %v288 = vpack.c.b16 %v276, %v275
    %v289 = vpack.c.b16 %v278, %v277
    %v290 = vpack.c.b16 %v280, %v279
    %v291 = vpack.c.b16 %v282, %v281
    %v292 = vpack.c.b16 %v284, %v283
    %301 = vmatprep.subr.bf16.mxu0 0
    %302 = vmatpush1.bf16.msra.mxu0 %v285
    %303 = vmatprep.subr.bf16.mxu0 0
    %304 = vmatpush1.bf16.msra.mxu0 %v286
    %305 = vmatprep.subr.bf16.mxu0 0
    %306 = vmatpush1.bf16.msra.mxu0 %v287
    %307 = vmatprep.subr.bf16.mxu0 0
    %308 = vmatpush1.bf16.msra.mxu0 %v288
    %309 = vmatprep.subr.bf16.mxu0 0
    %310 = vmatpush1.bf16.msra.mxu0 %v289
    %311 = vmatprep.subr.bf16.mxu0 0
    %312 = vmatpush1.bf16.msra.mxu0 %v290
    %313 = vmatprep.subr.bf16.mxu0 0
    %314 = vmatpush1.bf16.msra.mxu0 %v291
    %315 = vmatprep.subr.bf16.mxu0 0
    %316 = vmatpush1.bf16.msra.mxu0 %v292
    %317 = vmatprep.subr.bf16.mxu0 0
    %318 = vmatpush1.bf16.msra.mxu0 0
    %319 = vmatprep.subr.bf16.mxu0 0
    %320 = vmatpush1.bf16.msra.mxu0 0
    %321 = vmatprep.subr.bf16.mxu0 0
    %322 = vmatpush1.bf16.msra.mxu0 0
    %323 = vmatprep.subr.bf16.mxu0 0
    %324 = vmatpush1.bf16.msra.mxu0 0
    %325 = vmatprep.subr.bf16.mxu0 0
    %326 = vmatpush1.bf16.msra.mxu0 0
    %327 = vmatprep.subr.bf16.mxu0 0
    %328 = vmatpush1.bf16.msra.mxu0 0
    %329 = vmatprep.subr.bf16.mxu0 0
    %330 = vmatpush1.bf16.msra.mxu0 0
    %331 = vmatprep.subr.bf16.mxu0 0
    %332 = vmatpush1.bf16.msra.mxu0 0
    %333 = vmatprep.mubr.bf16.mxu0 0
    %334 = vmatmul.mubr.bf16.gmra.mrb[0].mxu0 %v229
    %v335 = vpop.f32.mrb[0].mxu0
    %v336 = vadd.f32 %v251, %v335
    %v337 = vpop.f32.mrb[0].mxu0
    %v338 = vpop.f32.mrb[0].mxu0
    %v339 = vpop.f32.mrb[0].mxu0
    %340 = vdwg.mxu0
    %341 = vrot.lane.b32.xlu0 %v336, 64
    %v342 = vpop.permute.xlu0 %341
    %v343 = vmul.f32 %v342, 0.5
    %v344 = vmul.f32 %v343, 1.442695
    %v345 = vpow.pop %v344
    %v346 = vld [vmem:[%s1] sm:$0xff]
    %v347 = vmul.f32 %v345, %v346
    %v348 = vadd.f32 %v336, %v347
    %v349 = vpack.c.bf16 %v348, %v348
    %v350 = vld [vmem:[#allocation10] sm:$0xf]
    %v351 = vld [vmem:[#allocation10 + $0x4] sm:$0xf]
    %v352 = vld [vmem:[#allocation10 + $0x8] sm:$0xf]
    %v353 = vld [vmem:[#allocation10 + $0xc] sm:$0xf]
    %v354 = vld [vmem:[#allocation10 + $0x10] sm:$0xf]
    %v355 = vld [vmem:[#allocation10 + $0x14] sm:$0xf]
    %v356 = vld [vmem:[#allocation10 + $0x18] sm:$0xf]
    %v357 = vld [vmem:[#allocation10 + $0x1c] sm:$0xf]
    %v358 = vld [vmem:[#allocation10 + $0x20] sm:$0xf]
    %v359 = vld [vmem:[#allocation10 + $0x24] sm:$0xf]
    %v360 = vld [vmem:[#allocation10 + $0x28] sm:$0xf]
    %v361 = vld [vmem:[#allocation10 + $0x2c] sm:$0xf]
    %v362 = vld [vmem:[#allocation10 + $0x30] sm:$0xf]
    %v363 = vld [vmem:[#allocation10 + $0x34] sm:$0xf]
    %v364 = vld [vmem:[#allocation10 + $0x38] sm:$0xf]
    %v365 = vld [vmem:[#allocation10 + $0x3c] sm:$0xf]
    %v366 = vld [vmem:[#allocation11] sm:$0x1]
    %v368 = vlaneseq
    %v369 = vshrl.u32 %v368, 7
    %v370 = vsub.s32 0, %v369
    %v371 = vrot.slane %v366, %v370
    %v389 = vunpack.c.l.b16 %v350
    %v390 = vunpack.c.l.b16 %v351
    %v391 = vunpack.c.l.b16 %v352
    %v392 = vunpack.c.l.b16 %v353
    %v393 = vunpack.c.l.b16 %v354
    %v394 = vunpack.c.l.b16 %v355
    %v395 = vunpack.c.l.b16 %v356
    %v396 = vunpack.c.l.b16 %v357
    %v397 = vunpack.c.l.b16 %v358
    %v398 = vunpack.c.l.b16 %v359
    %v399 = vunpack.c.l.b16 %v360
    %v400 = vunpack.c.l.b16 %v361
    %v401 = vunpack.c.l.b16 %v362
    %v402 = vunpack.c.l.b16 %v363
    %v403 = vunpack.c.l.b16 %v364
    %v404 = vunpack.c.l.b16 %v365
    %v405 = vpack.c.b16 %v390, %v389
    %v406 = vpack.c.b16 %v392, %v391
    %v407 = vpack.c.b16 %v394, %v393
    %v408 = vpack.c.b16 %v396, %v395
    %v409 = vpack.c.b16 %v398, %v397
    %v410 = vpack.c.b16 %v400, %v399
    %v411 = vpack.c.b16 %v402, %v401
    %v412 = vpack.c.b16 %v404, %v403
    %421 = vmatprep.subr.bf16.mxu0 0
    %422 = vmatpush1.bf16.msra.mxu0 %v405
    %423 = vmatprep.subr.bf16.mxu0 0
    %424 = vmatpush1.bf16.msra.mxu0 %v406
    %425 = vmatprep.subr.bf16.mxu0 0
    %426 = vmatpush1.bf16.msra.mxu0 %v407
    %427 = vmatprep.subr.bf16.mxu0 0
    %428 = vmatpush1.bf16.msra.mxu0 %v408
    %429 = vmatprep.subr.bf16.mxu0 0
    %430 = vmatpush1.bf16.msra.mxu0 %v409
    %431 = vmatprep.subr.bf16.mxu0 0
    %432 = vmatpush1.bf16.msra.mxu0 %v410
    %433 = vmatprep.subr.bf16.mxu0 0
    %434 = vmatpush1.bf16.msra.mxu0 %v411
    %435 = vmatprep.subr.bf16.mxu0 0
    %436 = vmatpush1.bf16.msra.mxu0 %v412
    %437 = vmatprep.subr.bf16.mxu0 0
    %438 = vmatpush1.bf16.msra.mxu0 0
    %439 = vmatprep.subr.bf16.mxu0 0
    %440 = vmatpush1.bf16.msra.mxu0 0
    %441 = vmatprep.subr.bf16.mxu0 0
    %442 = vmatpush1.bf16.msra.mxu0 0
    %443 = vmatprep.subr.bf16.mxu0 0
    %444 = vmatpush1.bf16.msra.mxu0 0
    %445 = vmatprep.subr.bf16.mxu0 0
    %446 = vmatpush1.bf16.msra.mxu0 0
    %447 = vmatprep.subr.bf16.mxu0 0
    %448 = vmatpush1.bf16.msra.mxu0 0
    %449 = vmatprep.subr.bf16.mxu0 0
    %450 = vmatpush1.bf16.msra.mxu0 0
    %451 = vmatprep.subr.bf16.mxu0 0
    %452 = vmatpush1.bf16.msra.mxu0 0
    %453 = vmatprep.mubr.bf16.mxu0 0
    %454 = vmatmul.mubr.bf16.gmra.mrb[0].mxu0 %v349
    %v455 = vpop.f32.mrb[0].mxu0
    %v456 = vadd.f32 %v371, %v455
    %v457 = vpop.f32.mrb[0].mxu0
    %v458 = vpop.f32.mrb[0].mxu0
    %v459 = vpop.f32.mrb[0].mxu0
    %460 = vdwg.mxu0
    %v461 = vmax.f32 %v456, 0.0
    %v462 = vpack.c.bf16 %v461, %v461
    %v463 = vld [vmem:[%s8] sm:$0xf]
    %v464 = vld [vmem:[%s8 + $0x4] sm:$0xf]
    %v465 = vld [vmem:[%s8 + $0x8] sm:$0xf]
    %v466 = vld [vmem:[%s8 + $0xc] sm:$0xf]
    %v467 = vld [vmem:[%s8 + $0x10] sm:$0xf]
    %v468 = vld [vmem:[%s8 + $0x14] sm:$0xf]
    %v469 = vld [vmem:[%s8 + $0x18] sm:$0xf]
    %v470 = vld [vmem:[%s8 + $0x1c] sm:$0xf]
    %v471 = vld [vmem:[%s8 + $0x20] sm:$0xf]
    %v472 = vld [vmem:[%s8 + $0x24] sm:$0xf]
    %v473 = vld [vmem:[%s8 + $0x28] sm:$0xf]
    %v474 = vld [vmem:[%s8 + $0x2c] sm:$0xf]
    %v475 = vld [vmem:[%s8 + $0x30] sm:$0xf]
    %v476 = vld [vmem:[%s8 + $0x34] sm:$0xf]
    %v477 = vld [vmem:[%s8 + $0x38] sm:$0xf]
    %v478 = vld [vmem:[%s8 + $0x3c] sm:$0xf]
    %v479 = vld [vmem:[%s9] sm:$0x1]
    %v481 = vlaneseq
    %v482 = vshrl.u32 %v481, 7
    %v483 = vsub.s32 0, %v482
    %v484 = vrot.slane %v479, %v483
    %v502 = vunpack.c.l.b16 %v463
    %v503 = vunpack.c.l.b16 %v464
    %v504 = vunpack.c.l.b16 %v465
    %v505 = vunpack.c.l.b16 %v466
    %v506 = vunpack.c.l.b16 %v467
    %v507 = vunpack.c.l.b16 %v468
    %v508 = vunpack.c.l.b16 %v469
    %v509 = vunpack.c.l.b16 %v470
    %v510 = vunpack.c.l.b16 %v471
    %v511 = vunpack.c.l.b16 %v472
    %v512 = vunpack.c.l.b16 %v473
    %v513 = vunpack.c.l.b16 %v474
    %v514 = vunpack.c.l.b16 %v475
    %v515 = vunpack.c.l.b16 %v476
    %v516 = vunpack.c.l.b16 %v477
    %v517 = vunpack.c.l.b16 %v478
    %v518 = vpack.c.b16 %v503, %v502
    %v519 = vpack.c.b16 %v505, %v504
    %v520 = vpack.c.b16 %v507, %v506
    %v521 = vpack.c.b16 %v509, %v508
    %v522 = vpack.c.b16 %v511, %v510
    %v523 = vpack.c.b16 %v513, %v512
    %v524 = vpack.c.b16 %v515, %v514
    %v525 = vpack.c.b16 %v517, %v516
    %534 = vmatprep.subr.bf16.mxu0 0
    %535 = vmatpush1.bf16.msra.mxu0 %v518
    %536 = vmatprep.subr.bf16.mxu0 0
    %537 = vmatpush1.bf16.msra.mxu0 %v519
    %538 = vmatprep.subr.bf16.mxu0 0
    %539 = vmatpush1.bf16.msra.mxu0 %v520
    %540 = vmatprep.subr.bf16.mxu0 0
    %541 = vmatpush1.bf16.msra.mxu0 %v521
    %542 = vmatprep.subr.bf16.mxu0 0
    %543 = vmatpush1.bf16.msra.mxu0 %v522
    %544 = vmatprep.subr.bf16.mxu0 0
    %545 = vmatpush1.bf16.msra.mxu0 %v523
    %546 = vmatprep.subr.bf16.mxu0 0
    %547 = vmatpush1.bf16.msra.mxu0 %v524
    %548 = vmatprep.subr.bf16.mxu0 0
    %549 = vmatpush1.bf16.msra.mxu0 %v525
    %550 = vmatprep.subr.bf16.mxu0 0
    %551 = vmatpush1.bf16.msra.mxu0 0
    %552 = vmatprep.subr.bf16.mxu0 0
    %553 = vmatpush1.bf16.msra.mxu0 0
    %554 = vmatprep.subr.bf16.mxu0 0
    %555 = vmatpush1.bf16.msra.mxu0 0
    %556 = vmatprep.subr.bf16.mxu0 0
    %557 = vmatpush1.bf16.msra.mxu0 0
    %558 = vmatprep.subr.bf16.mxu0 0
    %559 = vmatpush1.bf16.msra.mxu0 0
    %560 = vmatprep.subr.bf16.mxu0 0
    %561 = vmatpush1.bf16.msra.mxu0 0
    %562 = vmatprep.subr.bf16.mxu0 0
    %563 = vmatpush1.bf16.msra.mxu0 0
    %564 = vmatprep.subr.bf16.mxu0 0
    %565 = vmatpush1.bf16.msra.mxu0 0
    %566 = vmatprep.mubr.bf16.mxu0 0
    %567 = vmatmul.mubr.bf16.gmra.mrb[0].mxu0 %v462
    %v568 = vpop.f32.mrb[0].mxu0
    %v569 = vadd.f32 %v484, %v568
    %v570 = vpop.f32.mrb[0].mxu0
    %v571 = vpop.f32.mrb[0].mxu0
    %v572 = vpop.f32.mrb[0].mxu0
    %573 = vdwg.mxu0
    %v574 = vxor.u32 %v569, 2147483648
    %v575 = vmul.f32 %v574, 1.442695
    %v576 = vpow.pop %v575
    %v577 = vadd.f32 %v576, 1.0
    %v578 = vrcp.pop %v577
    %v579 = vmul.f32 1.0, %v578
    %580 = vst [vmem:[#allocation13] sm:$0xff] %v579
    %581 = vst [vmem:[%s11] sm:$0xff] %v348
    %582 = vst [vmem:[%s11 + $0x8] sm:$0xff] %v336
    // Predicated region
    $region66: #{_vae_forward_padded.1} parent=1 // pred_check
      _
    $region67: #{_vae_forward_padded.1} parent=1 // pred_check_branch
      %584 = sbr.rel (0) target = $region69
    $region68: #{_vae_forward_padded.1} parent=1 // pred_region
      %s586 = ssub.s32 128, 128
      %587 = vsyncadd [#allocation4], %s586
      %s589 = sshll.u32 [#allocation13], 4
      %s590 = int_to_ptr.vmem [resolvable:$true] %s589
      %592 = dma.vmem_to_hbm [thread:$0]  %s590, 128, %s10, [#allocation4]
    $region69: #{_vae_forward_padded.1} parent=1 // pred_fallthru
      _
    // Predicated region
    $region70: #{_vae_forward_padded.1} parent=1 // pred_check
      _
    $region71: #{_vae_forward_padded.1} parent=1 // pred_check_branch
      %594 = sbr.rel (0) target = $region73
    $region72: #{_vae_forward_padded.1} parent=1 // pred_region
      _
    $region73: #{_vae_forward_padded.1} parent=1 // pred_fallthru
      _
    // Predicated region
    $region74: #{_vae_forward_padded.1} parent=1 // pred_check
      _
    $region75: #{_vae_forward_padded.1} parent=1 // pred_check_branch
      %596 = sbr.rel (0) target = $region77
    $region76: #{_vae_forward_padded.1} parent=1 // pred_region
      %597 = dma.done [#allocation4], 128
    $region77: #{_vae_forward_padded.1} parent=1 // pred_fallthru
      _
    // Predicated region
    $region78: #{_vae_forward_padded.1} parent=1 // pred_check
      _
    $region79: #{_vae_forward_padded.1} parent=1 // pred_check_branch
      %599 = sbr.rel (0) target = $region81
    $region80: #{_vae_forward_padded.1} parent=1 // pred_region
      _
    $region81: #{_vae_forward_padded.1} parent=1 // pred_fallthru
      _
    %600 = vsyncpa [#allocation3], 1
    %601 = vsyncpa [#allocation6], 1
    %602 = vsyncpa [#allocation9], 1
    %603 = vsyncpa [#allocation12], 1
    %604 = vsyncpa [#allocation4], 1

</llo_original>
